<compile_context>
chip_gen: v5e
topology: v5e:2x2
jax: 0.10.0
libtpu: 0.0.40
codegen_flags: <defaults>
</compile_context>

<pallas_src>
import jax
import jax.numpy as jnp
from jax.experimental import pallas as pl
from jax.experimental.pallas import tpu as pltpu


def _make_residual_kernel(L, matmul_dtype):
    """Kernel factory. `L` = sequence length, `matmul_dtype` = MXU/tanh dtype."""

    def kernel(x_ref, w1_ref, w2_ref, pos_ref, out_ref):
        # x_ref:   (TR, C_in)        row tile (TR rows = whole sequences), f32
        # w1_ref:  (3, C_in, H_res)  k=3 conv weights, tap-major, transposed
        # w2_ref:  (H_res, C_out)    k=1 conv weights, transposed
        # pos_ref: (TR, 1) int32     position of each tile row within its seq
        # out_ref: (TR, C_out)
        x = x_ref[...]

        # First Tanh. In bf16 mode this runs on the bf16-capable EUP
        # (v6e/v7x) and doubles as the single hoisted cast for the tap dots.
        h = jnp.tanh(x.astype(matmul_dtype))

        def mm(a, b):
            return jnp.dot(a, b, preferred_element_type=jnp.float32)

        # Conv1d(kernel_size=3, padding=1, bias=False), shift-after-matmul:
        # per-tap (TR, C_in) @ (C_in, H_res) dots on the UNshifted h, f32 acc.
        y0 = mm(h, w1_ref[0])      # tap 0: contributes to y[t] from h[t-1]
        y1 = mm(h, w1_ref[1])      # tap 1: from h[t]
        y2 = mm(h, w1_ref[2])      # tap 2: from h[t+1]

        # Sequence-boundary masks (identical in every L-aligned tile). Rows
        # rolled across a sequence boundary or around the tile edge are
        # zeroed, which equals PyTorch's zero padding because the conv input
        # is tanh(x) and tanh(0) == 0.
        pos = pos_ref[...]                                   # (TR, 1) int32
        not_first = (pos != 0).astype(jnp.float32)           # 0.0 on seq starts
        not_last = (pos != L - 1).astype(jnp.float32)        # 0.0 on seq ends

        # Static sublane rolls (slices + concat on the row axis, XLU work that
        # rides a slot the VPU/EUP path does not use).
        y = (jnp.roll(y0, 1, axis=0) * not_first
             + y1
             + jnp.roll(y2, -1, axis=0) * not_last)

        # Second Tanh (bf16 on v6e/v7x in bf16 mode), then the 1x1 conv as a
        # matmul and the residual add on the pre-tanh input (f32).
        h2 = jnp.tanh(y.astype(matmul_dtype))
        z = mm(h2, w2_ref[...])
        out_ref[...] = (x + z).astype(out_ref.dtype)

    return kernel


def _choose_block_rows(B, L, target_rows=1024, max_rows=4096):
    """Pick a row-tile size: multiple of L (whole sequences per tile), multiple
    of 8 (sublane tiling) unless it equals N, divides N, near the measured
    512-2048-row streaming sweet spot."""
    N = B * L
    candidates = []
    for s in range(1, B + 1):
        if B % s:
            continue
        tr = s * L
        if tr % 8 != 0 and tr != N:
            continue
        candidates.append(tr)
    if not candidates:
        return N
    small = [c for c in candidates if c <= max_rows]
    pool = small if small else [min(candidates)]
    return min(pool, key=lambda tr: abs(tr - target_rows))


def residual_forward_nlc(x_nlc, w1, w2, matmul_dtype=jnp.float32, block_rows=None):
    """Residual block on channels-last activations (preferred entry point).

    x_nlc: (B, L, C_in) float32 -- channels-last, no HBM transposes needed.
    w1:    (H_res, C_in, 3)     -- PyTorch Conv1d weight layout (out, in, k).
    w2:    (C_out, H_res, 1)
    matmul_dtype: MXU operand + tanh dtype. jnp.bfloat16 recommended on
        v6e/v7x (bf16 EUP + half-width MXU operands); keep f32 on v5e.
        Accumulation and the residual add always stay f32.
    block_rows: optional row-tile override (must be a multiple of L, divide
        B*L, and be a multiple of 8 unless it equals B*L).
    """
    B, L, C_in = x_nlc.shape
    H_res, C_in_w, K = w1.shape
    C_out, H_res_w, K2 = w2.shape
    assert (C_in_w, K) == (C_in, 3)
    assert (H_res_w, K2) == (H_res, 1)
    assert C_out == C_in, "residual add requires num_hiddens == in_channels"

    matmul_dtype = jnp.dtype(matmul_dtype)
    N = B * L

    if block_rows is None:
        block_rows = _choose_block_rows(B, L)
    assert N % block_rows == 0, "row tile must divide B*L"
    assert block_rows % L == 0, "row tile must hold whole sequences"
    assert block_rows % 8 == 0 or block_rows == N, "row tile must be 8-aligned"

    # Fold the batch into rows: (B, L, C) -> (N, C) is a row-major no-op.
    x_flat = x_nlc.reshape(N, C_in)

    # (out, in, k) -> (k, in, out): each tap becomes a right-multiply matrix.
    # Cast wrapper-side so bf16 mode also halves the weights' VMEM footprint.
    w1_t = jnp.transpose(w1, (2, 1, 0)).astype(matmul_dtype)        # (3, C_in, H_res)
    w2_t = jnp.transpose(w2[:, :, 0], (1, 0)).astype(matmul_dtype)  # (H_res, C_out)

    # Per-tile position-within-sequence vector (tiny; fetched once thanks to
    # the constant index_map below, identical for every L-aligned tile).
    pos = (jnp.arange(block_rows, dtype=jnp.int32) % L)[:, None]    # (TR, 1)

    grid = (N // block_rows,)

    # Scoped-VMEM budget: double-buffered x/out tiles + pos + weights + ~7 live
    # lane-padded intermediates, with 2x headroom, clamped so it fits every
    # generation (v5e default 16 MiB, v7x physical 64 MiB).
    padded_row_bytes = 128 * 4
    est = (13 * block_rows * padded_row_bytes
           + (w1.size + w2.size) * matmul_dtype.itemsize + 4096)
    vmem_limit = int(min(48 * 2 ** 20, max(16 * 2 ** 20, 2 * est)))

    cost = pl.CostEstimate(
        flops=int(2 * N * C_in * 3 * H_res + 2 * N * H_res * C_out),
        transcendentals=int(N * (C_in + H_res)),            # two tanh passes
        bytes_accessed=int(2 * N * C_in * 4
                           + (w1.size + w2.size) * matmul_dtype.itemsize
                           + block_rows * 4),
    )

    out_flat = pl.pallas_call(
        _make_residual_kernel(L, matmul_dtype),
        out_shape=jax.ShapeDtypeStruct((N, C_out), x_flat.dtype),
        grid=grid,
        in_specs=[
            # Streaming row tiles of x (double-buffered by Pallas).  If xprof
            # shows exposed DMA on v7x, add pipeline_mode=pl.Buffered(3) here
            # and on out_specs.
            pl.BlockSpec((block_rows, C_in), lambda i: (i, 0)),
            # Weights + per-tile position vector: constant block index, so they
            # are brought into VMEM once and reused by every grid step.
            pl.BlockSpec((3, C_in, H_res), lambda i: (0, 0, 0)),
            pl.BlockSpec((H_res, C_out), lambda i: (0, 0)),
            pl.BlockSpec((block_rows, 1), lambda i: (0, 0)),
        ],
        # NOTE: with C_out < 128 this is a masked partial store; a lane-dense
        # (N/4, 128) output view would be faster but needs the consumer to
        # accept that packing, so it is not done here.
        out_specs=pl.BlockSpec((block_rows, C_out), lambda i: (i, 0)),
        compiler_params=pltpu.CompilerParams(
            dimension_semantics=("parallel",),   # megacore split on v7x
            vmem_limit_bytes=vmem_limit),
        cost_estimate=cost,
    )(x_flat, w1_t, w2_t, pos)

    return out_flat.reshape(B, L, C_out)


def residual_forward(x_ncl, w1, w2, matmul_dtype=jnp.float32, block_rows=None):
    """Drop-in wrapper for the PyTorch NCL (batch, channels, length) layout.

    Prefer `residual_forward_nlc` and keep the surrounding model channels-last:
    the two transposes below are whole-tensor HBM round trips the kernel does
    not need.
    """
    # TODO(synk): for NCL callers, fold the layout change into the kernel
    # (grid over (batch, L-tile), load (C, tile_L) blocks and transpose
    # in-VMEM) to avoid these two full HBM round trips — biggest win on v5e.
    out_nlc = residual_forward_nlc(
        jnp.transpose(x_ncl, (0, 2, 1)), w1, w2,
        matmul_dtype=matmul_dtype, block_rows=block_rows)
    return jnp.transpose(out_nlc, (0, 2, 1))


def residual_reference(x_ncl, w1, w2):
    """Pure-JAX reference matching the PyTorch module (NCL layout)."""
    h = jnp.tanh(x_ncl)
    y = jax.lax.conv_general_dilated(
        h, w1, window_strides=(1,), padding=((1, 1),),
        dimension_numbers=("NCH", "OIH", "NCH"))
    h2 = jnp.tanh(y)
    z = jax.lax.conv_general_dilated(
        h2, w2, window_strides=(1,), padding=((0, 0),),
        dimension_numbers=("NCH", "OIH", "NCH"))
    return x_ncl + z


if __name__ == "__main__":
    # Module hyperparameters (in_channels == num_hiddens so the residual adds).
    in_channels = 32
    num_hiddens = 32
    num_residual_hiddens = 16

    key = jax.random.PRNGKey(0)
    kx, kx2, kw1, kw2 = jax.random.split(key, 4)

    w1 = 0.1 * jax.random.normal(
        kw1, (num_residual_hiddens, in_channels, 3), dtype=jnp.float32)
    w2 = 0.1 * jax.random.normal(
        kw2, (num_hiddens, num_residual_hiddens, 1), dtype=jnp.float32)

    # --- Case 1: B=2, L=16 (one tile holding two sequences: exercises the
    # interior sequence-boundary masking). ------------------------------------
    B, L = 2, 16
    x_ncl = jax.random.normal(kx, (B, in_channels, L), dtype=jnp.float32)
    ref_ncl = residual_reference(x_ncl, w1, w2)
    ref_nlc = jnp.transpose(ref_ncl, (0, 2, 1))

    x_nlc = jnp.transpose(x_ncl, (0, 2, 1))
    out_nlc = jax.block_until_ready(residual_forward_nlc(x_nlc, w1, w2))
    assert out_nlc.shape == (B, L, num_hiddens)
    assert jnp.allclose(out_nlc, ref_nlc, atol=1e-5, rtol=1e-5), "f32 NLC mismatch"

    # PyTorch-layout (NCL) drop-in wrapper.
    out_ncl = jax.block_until_ready(residual_forward(x_ncl, w1, w2))
    assert out_ncl.shape == (B, num_hiddens, L)
    assert jnp.allclose(out_ncl, ref_ncl, atol=1e-5, rtol=1e-5), "f32 NCL mismatch"

    # bf16 MXU operands + bf16 tanh (v6e/v7x recommendation); f32 accumulation
    # and residual add.
    out_bf16 = jax.block_until_ready(
        residual_forward_nlc(x_nlc, w1, w2, matmul_dtype=jnp.bfloat16))
    assert out_bf16.shape == (B, L, num_hiddens)
    assert jnp.allclose(out_bf16, ref_nlc, atol=5e-2, rtol=5e-2), "bf16 mismatch"

    # --- Case 2: multi-tile grid (B=4, forced 16-row tiles -> 4 grid steps:
    # exercises tile-edge roll wrap-around masking and the parallel grid). ----
    B2 = 4
    x2_ncl = jax.random.normal(kx2, (B2, in_channels, L), dtype=jnp.float32)
    ref2_nlc = jnp.transpose(residual_reference(x2_ncl, w1, w2), (0, 2, 1))
    x2_nlc = jnp.transpose(x2_ncl, (0, 2, 1))
    out2 = jax.block_until_ready(
        residual_forward_nlc(x2_nlc, w1, w2, block_rows=16))
    assert out2.shape == (B2, L, num_hiddens)
    assert jnp.allclose(out2, ref2_nlc, atol=1e-5, rtol=1e-5), "multi-tile mismatch"

    print("KERNEL_OK")
</pallas_src>

<mosaic_0001>
module attributes {stable_mosaic.version = 11 : i64} {
  func.func @kernel(%arg0: i32, %arg1: memref<32x32xf32, #tpu.memory_space<vmem>>, %arg2: memref<3x32x16xf32, #tpu.memory_space<vmem>>, %arg3: memref<16x32xf32, #tpu.memory_space<vmem>>, %arg4: memref<32x1xi32, #tpu.memory_space<vmem>>, %arg5: memref<32x32xf32, #tpu.memory_space<vmem>>) attributes {dimension_semantics = [#tpu.dimension_semantics<parallel>], iteration_bounds = array<i64: 1>, scalar_prefetch = 0 : i64, scratch_operands = 0 : i64, tpu.core_type = #tpu.core_type<tc>, window_params = [{transform_indices = @transform_0, window_bounds = array<i64: 32, 32>}, {pipeline_mode = #tpu.pipeline_mode<synchronous>, transform_indices = @transform_1, window_bounds = array<i64: 3, 32, 16>}, {pipeline_mode = #tpu.pipeline_mode<synchronous>, transform_indices = @transform_2, window_bounds = array<i64: 16, 32>}, {pipeline_mode = #tpu.pipeline_mode<synchronous>, transform_indices = @transform_3, window_bounds = array<i64: 32, 1>}, {transform_indices = @transform_4, window_bounds = array<i64: 32, 32>}]} {
    %c0 = arith.constant 0 : index
    %c0_0 = arith.constant 0 : index
    %0 = vector.load %arg1[%c0, %c0_0] : memref<32x32xf32, #tpu.memory_space<vmem>>, vector<32x32xf32>
    %1 = math.tanh %0 : vector<32x32xf32>
    %c0_1 = arith.constant 0 : index
    %c0_2 = arith.constant 0 : index
    %c0_3 = arith.constant 0 : index
    %2 = vector.load %arg2[%c0_1, %c0_2, %c0_3] : memref<3x32x16xf32, #tpu.memory_space<vmem>>, vector<1x32x16xf32>
    %3 = vector.shape_cast %2 : vector<1x32x16xf32> to vector<32x16xf32>
    %cst = arith.constant dense<0.000000e+00> : vector<32x16xf32>
    %4 = tpu.matmul %1, %3, %cst {dimension_numbers = #tpu.dot_dimension_numbers<[1], [0], [0], [1], [0, 0, 1, 1], [], []>} : vector<32x32xf32>, vector<32x16xf32>, vector<32x16xf32> -> vector<32x16xf32>
    %c1 = arith.constant 1 : index
    %c0_4 = arith.constant 0 : index
    %c0_5 = arith.constant 0 : index
    %5 = vector.load %arg2[%c1, %c0_4, %c0_5] : memref<3x32x16xf32, #tpu.memory_space<vmem>>, vector<1x32x16xf32>
    %6 = vector.shape_cast %5 : vector<1x32x16xf32> to vector<32x16xf32>
    %cst_6 = arith.constant dense<0.000000e+00> : vector<32x16xf32>
    %7 = tpu.matmul %1, %6, %cst_6 {dimension_numbers = #tpu.dot_dimension_numbers<[1], [0], [0], [1], [0, 0, 1, 1], [], []>} : vector<32x32xf32>, vector<32x16xf32>, vector<32x16xf32> -> vector<32x16xf32>
    %c2 = arith.constant 2 : index
    %c0_7 = arith.constant 0 : index
    %c0_8 = arith.constant 0 : index
    %8 = vector.load %arg2[%c2, %c0_7, %c0_8] : memref<3x32x16xf32, #tpu.memory_space<vmem>>, vector<1x32x16xf32>
    %9 = vector.shape_cast %8 : vector<1x32x16xf32> to vector<32x16xf32>
    %cst_9 = arith.constant dense<0.000000e+00> : vector<32x16xf32>
    %10 = tpu.matmul %1, %9, %cst_9 {dimension_numbers = #tpu.dot_dimension_numbers<[1], [0], [0], [1], [0, 0, 1, 1], [], []>} : vector<32x32xf32>, vector<32x16xf32>, vector<32x16xf32> -> vector<32x16xf32>
    %c0_10 = arith.constant 0 : index
    %c0_11 = arith.constant 0 : index
    %11 = vector.load %arg4[%c0_10, %c0_11] : memref<32x1xi32, #tpu.memory_space<vmem>>, vector<32x1xi32>
    %c0_i32 = arith.constant 0 : i32
    %12 = vector.broadcast %c0_i32 : i32 to vector<32x1xi32>
    %13 = arith.cmpi ne, %11, %12 : vector<32x1xi32>
    %14 = arith.extui %13 : vector<32x1xi1> to vector<32x1xi32>
    %15 = arith.sitofp %14 : vector<32x1xi32> to vector<32x1xf32>
    %c15_i32 = arith.constant 15 : i32
    %16 = vector.broadcast %c15_i32 : i32 to vector<32x1xi32>
    %17 = arith.cmpi ne, %11, %16 : vector<32x1xi32>
    %18 = arith.extui %17 : vector<32x1xi1> to vector<32x1xi32>
    %19 = arith.sitofp %18 : vector<32x1xi32> to vector<32x1xf32>
    %20 = vector.extract_strided_slice %4 {offsets = [31, 0], sizes = [1, 16], strides = [1, 1]} : vector<32x16xf32> to vector<1x16xf32>
    %21 = vector.extract_strided_slice %4 {offsets = [0, 0], sizes = [31, 16], strides = [1, 1]} : vector<32x16xf32> to vector<31x16xf32>
    %22 = tpu.concatenate %20, %21 in 0 : vector<1x16xf32>, vector<31x16xf32> -> vector<32x16xf32>
    %23 = vector.broadcast %15 : vector<32x1xf32> to vector<32x16xf32>
    %24 = arith.mulf %22, %23 : vector<32x16xf32>
    %25 = arith.addf %24, %7 : vector<32x16xf32>
    %26 = vector.extract_strided_slice %10 {offsets = [1, 0], sizes = [31, 16], strides = [1, 1]} : vector<32x16xf32> to vector<31x16xf32>
    %27 = vector.extract_strided_slice %10 {offsets = [0, 0], sizes = [1, 16], strides = [1, 1]} : vector<32x16xf32> to vector<1x16xf32>
    %28 = tpu.concatenate %26, %27 in 0 : vector<31x16xf32>, vector<1x16xf32> -> vector<32x16xf32>
    %29 = vector.broadcast %19 : vector<32x1xf32> to vector<32x16xf32>
    %30 = arith.mulf %28, %29 : vector<32x16xf32>
    %31 = arith.addf %25, %30 : vector<32x16xf32>
    %32 = math.tanh %31 : vector<32x16xf32>
    %c0_12 = arith.constant 0 : index
    %c0_13 = arith.constant 0 : index
    %33 = vector.load %arg3[%c0_12, %c0_13] : memref<16x32xf32, #tpu.memory_space<vmem>>, vector<16x32xf32>
    %cst_14 = arith.constant dense<0.000000e+00> : vector<32x32xf32>
    %34 = tpu.matmul %32, %33, %cst_14 {dimension_numbers = #tpu.dot_dimension_numbers<[1], [0], [0], [1], [0, 0, 1, 1], [], []>} : vector<32x16xf32>, vector<16x32xf32>, vector<32x32xf32> -> vector<32x32xf32>
    %35 = arith.addf %0, %34 : vector<32x32xf32>
    %c0_15 = arith.constant 0 : index
    %c0_16 = arith.constant 0 : index
    %36 = vector.load %arg5[%c0_15, %c0_16] : memref<32x32xf32, #tpu.memory_space<vmem>>, vector<32x32xf32>
    tpu.vector_store %arg5[%c0_15, %c0_16], %35 {strides = array<i32>} : memref<32x32xf32, #tpu.memory_space<vmem>>, vector<32x32xf32>,
    return
  }
  func.func @transform_0(%arg0: i32) -> (i32, i32) {
    %c0_i32 = arith.constant 0 : i32
    %c0_i32_0 = arith.constant 0 : i32
    return %arg0, %c0_i32 : i32, i32
  }
  func.func @transform_1(%arg0: i32) -> (i32, i32, i32) {
    %c0_i32 = arith.constant 0 : i32
    %c0_i32_0 = arith.constant 0 : i32
    %c0_i32_1 = arith.constant 0 : i32
    %c0_i32_2 = arith.constant 0 : i32
    return %c0_i32, %c0_i32_0, %c0_i32_1 : i32, i32, i32
  }
  func.func @transform_2(%arg0: i32) -> (i32, i32) {
    %c0_i32 = arith.constant 0 : i32
    %c0_i32_0 = arith.constant 0 : i32
    %c0_i32_1 = arith.constant 0 : i32
    return %c0_i32, %c0_i32_0 : i32, i32
  }
  func.func @transform_3(%arg0: i32) -> (i32, i32) {
    %c0_i32 = arith.constant 0 : i32
    %c0_i32_0 = arith.constant 0 : i32
    %c0_i32_1 = arith.constant 0 : i32
    return %c0_i32, %c0_i32_0 : i32, i32
  }
  func.func @transform_4(%arg0: i32) -> (i32, i32) {
    %c0_i32 = arith.constant 0 : i32
    %c0_i32_0 = arith.constant 0 : i32
    return %arg0, %c0_i32 : i32, i32
  }
}

</mosaic_0001>

<llo_original>
// kernel: tpu_custom_call.1
$region0: #{tpu_custom_call.1}
  #allocation0 [shape = 'u32[]', space=smem, size = 0x4, offset = 0x4, fixed_abs, tag = 'smem constant byte address 0x4 - core index']
  #allocation1 [shape = 'u32[72,128]{1,0:T(1,128)}', space=vmem, size = 0x9000, scoped, tag = 'internal scratch']
  %s0 = inlined_call_operand.vmem [shape: f32[32,32], index: 0, kind: input, shape index: {}]
  %s1 = inlined_call_operand.vmem [shape: f32[3,32,16], index: 1, kind: input, shape index: {}]
  %s2 = inlined_call_operand.vmem [shape: f32[16,32], index: 2, kind: input, shape index: {}]
  %s3 = inlined_call_operand.vmem [shape: s32[32,1], index: 3, kind: input, shape index: {}]
  %s4 = inlined_call_operand.hbm [shape: f32[32,32], index: 4, kind: output, shape index: {}]
  %s5 = sld [smem:[#allocation0]]
  $region26: #{tpu_custom_call.1} parent=0
    _
  %s7 = ssub.s32 1, %s5
  %s8 = scalar_select 0, %s7, %s5
  $region1: #{tpu_custom_call.1} parent=0
    #allocation2 [shape = 'u8[16384]{0}', space=vmem, size = 0x4000, scoped, tag = 'output window, operand 0, single buffered']
    #allocation3 [shape = 's32[1]{0}', space=sflag, size = 0x4, scoped, tag = 'scoped memory for tpu_custom_call.1']
    %9 = vsyncpa [#allocation3], 0
    // Predicated region
    $region2: #{tpu_custom_call.1} parent=1 // pred_check
      _
    $region3: #{tpu_custom_call.1} parent=1 // pred_check_branch
      %11 = sbr.rel (0) target = $region5
    $region4: #{tpu_custom_call.1} parent=1 // pred_region
      _
    $region5: #{tpu_custom_call.1} parent=1 // pred_fallthru
      _
    // Predicated region
    $region6: #{tpu_custom_call.1} parent=1 // pred_check
      _
    $region7: #{tpu_custom_call.1} parent=1 // pred_check_branch
      %13 = sbr.rel (0) target = $region9
    $region8: #{tpu_custom_call.1} parent=1 // pred_region
      _
    $region9: #{tpu_custom_call.1} parent=1 // pred_fallthru
      _
    // Predicated region
    $region10: #{tpu_custom_call.1} parent=1 // pred_check
      _
    $region11: #{tpu_custom_call.1} parent=1 // pred_check_branch
      %15 = sbr.rel (0) target = $region13
    $region12: #{tpu_custom_call.1} parent=1 // pred_region
      _
    $region13: #{tpu_custom_call.1} parent=1 // pred_fallthru
      _
    // Predicated region
    $region14: #{tpu_custom_call.1} parent=1 // pred_check
      _
    $region15: #{tpu_custom_call.1} parent=1 // pred_check_branch
      %17 = sbr.rel (0) target = $region17
    $region16: #{tpu_custom_call.1} parent=1 // pred_region
      _
    $region17: #{tpu_custom_call.1} parent=1 // pred_fallthru
      _
    %v18 = vld [vmem:[%s0] sm:$0xff]
    %v19 = vld [vmem:[%s0 + $0x8] sm:$0xff]
    %v20 = vld [vmem:[%s0 + $0x10] sm:$0xff]
    %v21 = vld [vmem:[%s0 + $0x18] sm:$0xff]
    %v22 = vtanh.pop %v18
    %v23 = vtanh.pop %v19
    %v24 = vtanh.pop %v20
    %v25 = vtanh.pop %v21
    %v26 = vld [vmem:[%s1] sm:$0xff]
    %v27 = vld [vmem:[%s1 + $0x8] sm:$0xff]
    %v28 = vld [vmem:[%s1 + $0x10] sm:$0xff]
    %v29 = vld [vmem:[%s1 + $0x18] sm:$0xff]
    %vm30 = vcmask 261120
    %v32 = vsel %vm30, %v22, 0
    %v35 = vsel %vm30, %v23, 0
    %v38 = vsel %vm30, %v24, 0
    %v41 = vsel %vm30, %v25, 0
    %43 = vmatpush.msra.mxu0 0.0
    %44 = vmatpush.msra.mxu0 0.0
    %45 = vmatpush.msra.mxu0 0.0
    %46 = vmatpush.msra.mxu0 0.0
    %47 = vmatpush.msra.mxu0 0.0
    %48 = vmatpush.msra.mxu0 0.0
    %49 = vmatpush.msra.mxu0 0.0
    %50 = vmatpush.msra.mxu0 0.0
    %51 = vmatpush.msra.mxu0 0.0
    %52 = vmatpush.msra.mxu0 0.0
    %53 = vmatpush.msra.mxu0 0.0
    %54 = vmatpush.msra.mxu0 0.0
    %55 = vmatpush.msra.mxu0 %v29
    %56 = vmatpush.msra.mxu0 %v28
    %57 = vmatpush.msra.mxu0 %v27
    %58 = vmatpush.msra.mxu0 %v26
    %59 = vmatmul.f32.gmra.mxu0 %v32
    %v60 = vpop.f32.mrf.mxu0
    %v61 = vadd.f32 0.0, %v60
    %62 = vmatmul.f32.gmra.mxu0 %v35
    %v63 = vpop.f32.mrf.mxu0
    %v64 = vadd.f32 0.0, %v63
    %65 = vmatmul.f32.gmra.mxu0 %v38
    %v66 = vpop.f32.mrf.mxu0
    %v67 = vadd.f32 0.0, %v66
    %68 = vmatmul.f32.gmra.mxu0 %v41
    %v69 = vpop.f32.mrf.mxu0
    %v70 = vadd.f32 0.0, %v69
    %71 = vdwg.mxu0
    %s72 = scalar_lea.vmem %s1, 32
    %v73 = vld [vmem:[%s72] sm:$0xff]
    %v74 = vld [vmem:[%s72 + $0x8] sm:$0xff]
    %v75 = vld [vmem:[%s72 + $0x10] sm:$0xff]
    %v76 = vld [vmem:[%s72 + $0x18] sm:$0xff]
    %77 = vmatpush.msra.mxu0 0.0
    %78 = vmatpush.msra.mxu0 0.0
    %79 = vmatpush.msra.mxu0 0.0
    %80 = vmatpush.msra.mxu0 0.0
    %81 = vmatpush.msra.mxu0 0.0
    %82 = vmatpush.msra.mxu0 0.0
    %83 = vmatpush.msra.mxu0 0.0
    %84 = vmatpush.msra.mxu0 0.0
    %85 = vmatpush.msra.mxu0 0.0
    %86 = vmatpush.msra.mxu0 0.0
    %87 = vmatpush.msra.mxu0 0.0
    %88 = vmatpush.msra.mxu0 0.0
    %89 = vmatpush.msra.mxu0 %v76
    %90 = vmatpush.msra.mxu0 %v75
    %91 = vmatpush.msra.mxu0 %v74
    %92 = vmatpush.msra.mxu0 %v73
    %93 = vmatmul.f32.gmra.mxu0 %v32
    %v94 = vpop.f32.mrf.mxu0
    %v95 = vadd.f32 0.0, %v94
    %96 = vmatmul.f32.gmra.mxu0 %v35
    %v97 = vpop.f32.mrf.mxu0
    %v98 = vadd.f32 0.0, %v97
    %99 = vmatmul.f32.gmra.mxu0 %v38
    %v100 = vpop.f32.mrf.mxu0
    %v101 = vadd.f32 0.0, %v100
    %102 = vmatmul.f32.gmra.mxu0 %v41
    %v103 = vpop.f32.mrf.mxu0
    %v104 = vadd.f32 0.0, %v103
    %105 = vdwg.mxu0
    %s106 = scalar_lea.vmem %s1, 64
    %v107 = vld [vmem:[%s106] sm:$0xff]
    %v108 = vld [vmem:[%s106 + $0x8] sm:$0xff]
    %v109 = vld [vmem:[%s106 + $0x10] sm:$0xff]
    %v110 = vld [vmem:[%s106 + $0x18] sm:$0xff]
    %111 = vmatpush.msra.mxu0 0.0
    %112 = vmatpush.msra.mxu0 0.0
    %113 = vmatpush.msra.mxu0 0.0
    %114 = vmatpush.msra.mxu0 0.0
    %115 = vmatpush.msra.mxu0 0.0
    %116 = vmatpush.msra.mxu0 0.0
    %117 = vmatpush.msra.mxu0 0.0
    %118 = vmatpush.msra.mxu0 0.0
    %119 = vmatpush.msra.mxu0 0.0
    %120 = vmatpush.msra.mxu0 0.0
    %121 = vmatpush.msra.mxu0 0.0
    %122 = vmatpush.msra.mxu0 0.0
    %123 = vmatpush.msra.mxu0 %v110
    %124 = vmatpush.msra.mxu0 %v109
    %125 = vmatpush.msra.mxu0 %v108
    %126 = vmatpush.msra.mxu0 %v107
    %127 = vmatmul.f32.gmra.mxu0 %v32
    %v128 = vpop.f32.mrf.mxu0
    %v129 = vadd.f32 0.0, %v128
    %130 = vmatmul.f32.gmra.mxu0 %v35
    %v131 = vpop.f32.mrf.mxu0
    %v132 = vadd.f32 0.0, %v131
    %133 = vmatmul.f32.gmra.mxu0 %v38
    %v134 = vpop.f32.mrf.mxu0
    %v135 = vadd.f32 0.0, %v134
    %136 = vmatmul.f32.gmra.mxu0 %v41
    %v137 = vpop.f32.mrf.mxu0
    %v138 = vadd.f32 0.0, %v137
    %139 = vdwg.mxu0
    %v140 = vld [vmem:[%s3] sm:$0xff]
    %v141 = vld [vmem:[%s3 + $0x8] sm:$0xff]
    %v142 = vld [vmem:[%s3 + $0x10] sm:$0xff]
    %v143 = vld [vmem:[%s3 + $0x18] sm:$0xff]
    %vm144 = vcmp.ne.s32.totalorder %v140, 0
    %vm145 = vcmp.ne.s32.totalorder %v141, 0
    %vm146 = vcmp.ne.s32.totalorder %v142, 0
    %vm147 = vcmp.ne.s32.totalorder %v143, 0
    %v148 = vsel %vm144, 1, 0
    %v149 = vsel %vm145, 1, 0
    %v150 = vsel %vm146, 1, 0
    %v151 = vsel %vm147, 1, 0
    %v152 = vcvt.s32.f32 %v148
    %v153 = vcvt.s32.f32 %v149
    %v154 = vcvt.s32.f32 %v150
    %v155 = vcvt.s32.f32 %v151
    %vm156 = vcmp.ne.s32.totalorder %v140, 15
    %vm157 = vcmp.ne.s32.totalorder %v141, 15
    %vm158 = vcmp.ne.s32.totalorder %v142, 15
    %vm159 = vcmp.ne.s32.totalorder %v143, 15
    %v160 = vsel %vm156, 1, 0
    %v161 = vsel %vm157, 1, 0
    %v162 = vsel %vm158, 1, 0
    %v163 = vsel %vm159, 1, 0
    %v164 = vcvt.s32.f32 %v160
    %v165 = vcvt.s32.f32 %v161
    %v166 = vcvt.s32.f32 %v162
    %v167 = vcvt.s32.f32 %v163
    %v169 = vrot.slane %v70, 7
    %vm174 = vcmask 1040384
    %v175 = vrot.slane %v61, 7
    %v176 = vrot.slane %v64, 7
    %v177 = vsel %vm174, %v175, %v176
    %v178 = vrot.slane %v67, 7
    %v179 = vsel %vm174, %v176, %v178
    %v180 = vsel %vm174, %v178, %v169
    %v185 = vsel %vm174, %v169, %v175
    %187 = vset.pattern.permute.xlu0 0
    %188 = vperm.xlu0 %187, %v152
    %v189 = vpop.permute.xlu0 %188
    %192 = vset.pattern.permute.xlu0 0
    %193 = vperm.xlu0 %192, %v153
    %v194 = vpop.permute.xlu0 %193
    %197 = vset.pattern.permute.xlu0 0
    %198 = vperm.xlu0 %197, %v154
    %v199 = vpop.permute.xlu0 %198
    %202 = vset.pattern.permute.xlu0 0
    %203 = vperm.xlu0 %202, %v155
    %v204 = vpop.permute.xlu0 %203
    %v206 = vmul.f32 %v185, %v189
    %v207 = vmul.f32 %v177, %v194
    %v208 = vmul.f32 %v179, %v199
    %v209 = vmul.f32 %v180, %v204
    %v210 = vadd.f32 %v206, %v95
    %v211 = vadd.f32 %v207, %v98
    %v212 = vadd.f32 %v208, %v101
    %v213 = vadd.f32 %v209, %v104
    %vm218 = vcmask 1046528
    %v219 = vrot.slane %v129, 1
    %v220 = vrot.slane %v132, 1
    %v221 = vsel %vm218, %v219, %v220
    %v222 = vrot.slane %v135, 1
    %v223 = vsel %vm218, %v220, %v222
    %v224 = vrot.slane %v138, 1
    %v225 = vsel %vm218, %v222, %v224
    %v231 = vsel %vm218, %v224, %v219
    %233 = vset.pattern.permute.xlu0 0
    %234 = vperm.xlu0 %233, %v164
    %v235 = vpop.permute.xlu0 %234
    %238 = vset.pattern.permute.xlu0 0
    %239 = vperm.xlu0 %238, %v165
    %v240 = vpop.permute.xlu0 %239
    %243 = vset.pattern.permute.xlu0 0
    %244 = vperm.xlu0 %243, %v166
    %v245 = vpop.permute.xlu0 %244
    %248 = vset.pattern.permute.xlu0 0
    %249 = vperm.xlu0 %248, %v167
    %v250 = vpop.permute.xlu0 %249
    %v252 = vmul.f32 %v221, %v235
    %v253 = vmul.f32 %v223, %v240
    %v254 = vmul.f32 %v225, %v245
    %v255 = vmul.f32 %v231, %v250
    %v256 = vadd.f32 %v210, %v252
    %v257 = vadd.f32 %v211, %v253
    %v258 = vadd.f32 %v212, %v254
    %v259 = vadd.f32 %v213, %v255
    %v260 = vtanh.pop %v256
    %v261 = vtanh.pop %v257
    %v262 = vtanh.pop %v258
    %v263 = vtanh.pop %v259
    %v264 = vld [vmem:[%s2] sm:$0xff]
    %v265 = vld [vmem:[%s2 + $0x8] sm:$0xff]
    %vm266 = vcmask 130048
    %v268 = vsel %vm266, %v260, 0
    %v271 = vsel %vm266, %v261, 0
    %v274 = vsel %vm266, %v262, 0
    %v277 = vsel %vm266, %v263, 0
    %279 = vmatpush.msra.mxu0 0.0
    %280 = vmatpush.msra.mxu0 0.0
    %281 = vmatpush.msra.mxu0 0.0
    %282 = vmatpush.msra.mxu0 0.0
    %283 = vmatpush.msra.mxu0 0.0
    %284 = vmatpush.msra.mxu0 0.0
    %285 = vmatpush.msra.mxu0 0.0
    %286 = vmatpush.msra.mxu0 0.0
    %287 = vmatpush.msra.mxu0 0.0
    %288 = vmatpush.msra.mxu0 0.0
    %289 = vmatpush.msra.mxu0 0.0
    %290 = vmatpush.msra.mxu0 0.0
    %291 = vmatpush.msra.mxu0 0.0
    %292 = vmatpush.msra.mxu0 0.0
    %293 = vmatpush.msra.mxu0 %v265
    %294 = vmatpush.msra.mxu0 %v264
    %295 = vmatmul.f32.gmra.mxu0 %v268
    %v296 = vpop.f32.mrf.mxu0
    %v297 = vadd.f32 0.0, %v296
    %298 = vmatmul.f32.gmra.mxu0 %v271
    %v299 = vpop.f32.mrf.mxu0
    %v300 = vadd.f32 0.0, %v299
    %301 = vmatmul.f32.gmra.mxu0 %v274
    %v302 = vpop.f32.mrf.mxu0
    %v303 = vadd.f32 0.0, %v302
    %304 = vmatmul.f32.gmra.mxu0 %v277
    %v305 = vpop.f32.mrf.mxu0
    %v306 = vadd.f32 0.0, %v305
    %307 = vdwg.mxu0
    %v308 = vadd.f32 %v18, %v297
    %v309 = vadd.f32 %v19, %v300
    %v310 = vadd.f32 %v20, %v303
    %v311 = vadd.f32 %v21, %v306
    %312 = vst.msk [vmem:[#allocation2] sm:$0xff] %vm30, %v308
    %313 = vst.msk [vmem:[#allocation2 + $0x8] sm:$0xff] %vm30, %v309
    %314 = vst.msk [vmem:[#allocation2 + $0x10] sm:$0xff] %vm30, %v310
    %315 = vst.msk [vmem:[#allocation2 + $0x18] sm:$0xff] %vm30, %v311
    // Predicated region
    $region18: #{tpu_custom_call.1} parent=1 // pred_check
      _
    $region19: #{tpu_custom_call.1} parent=1 // pred_check_branch
      %317 = sbr.rel (0) target = $region21
    $region20: #{tpu_custom_call.1} parent=1 // pred_region
      %319 = vsyncadd [#allocation3], 0
      %s320 = sshll.u32 [#allocation2], 4
      %s321 = int_to_ptr.vmem [resolvable:$true] %s320
      %s322 = sshll.u32 %s4, 4
      %s323 = int_to_ptr.hbm [resolvable:$true] %s322
      %328 = dma.vmem_to_hbm [thread:$0]  %s321, 512, %s323, [#allocation3], 128, 128, 8
    $region21: #{tpu_custom_call.1} parent=1 // pred_fallthru
      _
    // Predicated region
    $region22: #{tpu_custom_call.1} parent=1 // pred_check
      _
    $region23: #{tpu_custom_call.1} parent=1 // pred_check_branch
      %330 = sbr.rel (0) target = $region25
    $region24: #{tpu_custom_call.1} parent=1 // pred_region
      %332 = dma.done [#allocation3], 512
    $region25: #{tpu_custom_call.1} parent=1 // pred_fallthru
      _
    %333 = vsyncpa [#allocation3], 1

</llo_original>
